<compile_context>
chip_gen: v7x
topology: tpu7x:2x2x1
jax: 0.10.0
libtpu: 0.0.40
codegen_flags: <defaults>
</compile_context>

<pallas_src>
import jax
import jax.numpy as jnp
from jax import lax
from jax.experimental import pallas as pl
from jax.experimental.pallas import tpu as pltpu


def _round_up(x, m):
    return ((x + m - 1) // m) * m


def critic_kernel(x_ref, a_ref, w1_ref, b1_ref, wa_ref, ba_ref,
                  w2_ref, b2_ref, wv_ref, bv_ref, v_ref):
    H = w1_ref.shape[1]  # hidden_dim (128)

    # State branch: relu(x @ W1 + b1).  bias + ReLU + bf16 cast are fused so
    # the f32 intermediate is consumed immediately by its half of linear2.
    h1 = jnp.dot(x_ref[...].astype(jnp.bfloat16), w1_ref[...],
                 preferred_element_type=jnp.float32)
    h1 = jnp.maximum(h1 + b1_ref[...], 0.0).astype(jnp.bfloat16)
    acc = jnp.dot(h1, w2_ref[pl.ds(0, H), :],
                  preferred_element_type=jnp.float32)

    # Action branch: relu(a @ Wa + ba) -> accumulate its half of linear2.
    ha = jnp.dot(a_ref[...].astype(jnp.bfloat16), wa_ref[...],
                 preferred_element_type=jnp.float32)
    ha = jnp.maximum(ha + ba_ref[...], 0.0).astype(jnp.bfloat16)
    acc = acc + jnp.dot(ha, w2_ref[pl.ds(H, H), :],
                        preferred_element_type=jnp.float32)

    # linear2 epilogue (f32).
    h2 = jnp.maximum(acc + b2_ref[...], 0.0)              # (tile_b, H) f32

    # Value head, lane-dense: wv (8, H; row 0 is the real weight) contracted
    # against h2's last dim (NT dot_general) -> (8, tile_b); keep row 0.
    v8 = lax.dot_general(wv_ref[...], h2, (((1,), (1,)), ((), ())),
                         preferred_element_type=jnp.float32)
    v_ref[...] = (v8[0:1, :] + bv_ref[0, 0]).astype(v_ref.dtype)


@jax.jit
def critic_forward(inputs, actions, params):
    """inputs: (B, input_dim) f32, actions: (B, action_dim) f32 -> (B, 1) f32."""
    w1, b1, wa, ba, w2, b2, wv8, bv = params
    B, I = inputs.shape
    A = actions.shape[1]
    H = w1.shape[1]

    # Batch tiling: single tile for small B; >= 2 tiles (megacore) of 128-512
    # rows (multiple of 128 keeps the (1, tile_b) output block lane-aligned).
    if B <= 128:
        tile_b = _round_up(max(B, 8), 16)
    else:
        n_target = max(2, pl.cdiv(B, 512))
        tile_b = _round_up(pl.cdiv(B, n_target), 128)
    num_tiles = pl.cdiv(B, tile_b)
    b_pad = num_tiles * tile_b

    if b_pad != B:  # only emitted when B isn't tile-aligned; pad rows are
        inputs = jnp.pad(inputs, ((0, b_pad - B), (0, 0)))      # discarded
        actions = jnp.pad(actions, ((0, b_pad - B), (0, 0)))    # by the slice

    flops = 2 * b_pad * (I * H + A * H + 2 * H * H + H)
    bytes_accessed = (b_pad * (I + A + 1) * 4
                      + (I * H + A * H + 2 * H * H) * 2
                      + (3 * H + 8 * H + 1) * 4)
    cost = pl.CostEstimate(flops=flops, transcendentals=0,
                           bytes_accessed=bytes_accessed)

    out = pl.pallas_call(
        critic_kernel,
        out_shape=jax.ShapeDtypeStruct((1, b_pad), jnp.float32),
        grid=(num_tiles,),
        in_specs=[
            pl.BlockSpec((tile_b, I), lambda i: (i, 0)),   # inputs  (streamed)
            pl.BlockSpec((tile_b, A), lambda i: (i, 0)),   # actions (streamed)
            pl.BlockSpec((I, H), lambda i: (0, 0)),        # W1  bf16 (resident)
            pl.BlockSpec((1, H), lambda i: (0, 0)),        # b1  f32
            pl.BlockSpec((A, H), lambda i: (0, 0)),        # Wa  bf16
            pl.BlockSpec((1, H), lambda i: (0, 0)),        # ba  f32
            pl.BlockSpec((2 * H, H), lambda i: (0, 0)),    # W2  bf16
            pl.BlockSpec((1, H), lambda i: (0, 0)),        # b2  f32
            pl.BlockSpec((8, H), lambda i: (0, 0)),        # wv (row 0) f32
            pl.BlockSpec(memory_space=pltpu.SMEM),         # bv scalar in SMEM
        ],
        out_specs=pl.BlockSpec((1, tile_b), lambda i: (0, i)),   # lane-dense
        compiler_params=pltpu.CompilerParams(
            dimension_semantics=("parallel",)),
        cost_estimate=cost,
    )(inputs, actions, w1, b1, wa, ba, w2, b2, wv8, bv)

    return out.reshape(b_pad, 1)[:B]


def init_critic_params(key, input_dim, action_dim, hidden_dim):
    """PyTorch-nn.Linear-like init U(-1/sqrt(fan_in), 1/sqrt(fan_in)).

    Weights are stored (in_features, out_features); matmul weights are bf16,
    biases f32.  The value-head weight is stored as an (8, hidden_dim) f32
    block whose row 0 is the real weight (rows 1..7 are zero) so the in-kernel
    NT matmul has an aligned 8-row LHS; its bias is a (1, 1) scalar for SMEM.
    """
    def linear(k, fan_in, fan_out):
        kw, kb = jax.random.split(k)
        bound = 1.0 / jnp.sqrt(jnp.float32(fan_in))
        w = jax.random.uniform(kw, (fan_in, fan_out), jnp.float32, -bound, bound)
        b = jax.random.uniform(kb, (1, fan_out), jnp.float32, -bound, bound)
        return w, b

    k1, k2, k3, k4 = jax.random.split(key, 4)
    w1, b1 = linear(k1, input_dim, hidden_dim)          # linear1
    wa, ba = linear(k2, action_dim, hidden_dim)         # linear_action
    w2, b2 = linear(k3, 2 * hidden_dim, hidden_dim)     # linear2 (on concat)
    wv, bv = linear(k4, hidden_dim, 1)                  # V

    wv8 = jnp.zeros((8, hidden_dim), jnp.float32).at[0].set(wv[:, 0])

    return (w1.astype(jnp.bfloat16), b1,
            wa.astype(jnp.bfloat16), ba,
            w2.astype(jnp.bfloat16), b2,
            wv8, bv.reshape(1, 1))


def critic_reference(inputs, actions, params):
    """Pure-XLA reference with matching numerics (bf16 matmul inputs, f32 acc)."""
    w1, b1, wa, ba, w2, b2, wv8, bv = params
    h1 = jnp.maximum(
        jnp.dot(inputs.astype(jnp.bfloat16), w1,
                preferred_element_type=jnp.float32) + b1, 0.0)
    ha = jnp.maximum(
        jnp.dot(actions.astype(jnp.bfloat16), wa,
                preferred_element_type=jnp.float32) + ba, 0.0)
    h = jnp.concatenate([h1, ha], axis=1).astype(jnp.bfloat16)
    h2 = jnp.maximum(
        jnp.dot(h, w2, preferred_element_type=jnp.float32) + b2, 0.0)
    return jnp.dot(h2, wv8[0:1, :].T) + bv[0, 0]


if __name__ == "__main__":
    batch = 2
    input_dim = 16
    action_dim = 4
    hidden_dim = 128   # module default; lane/MXU aligned

    key = jax.random.PRNGKey(0)
    kp, kx, ka = jax.random.split(key, 3)

    params = init_critic_params(kp, input_dim, action_dim, hidden_dim)
    inputs = jax.random.normal(kx, (batch, input_dim), jnp.float32)
    actions = jax.random.normal(ka, (batch, action_dim), jnp.float32)

    v = critic_forward(inputs, actions, params)
    jax.block_until_ready(v)

    v_ref = critic_reference(inputs, actions, params)
    assert v.shape == (batch, 1)
    assert jnp.allclose(v, v_ref, atol=2e-3, rtol=2e-3), (v, v_ref)

    print("KERNEL_OK")
</pallas_src>

<mosaic_0001>
module attributes {stable_mosaic.version = 11 : i64} {
  func.func @critic_kernel(%arg0: i32, %arg1: memref<16x16xf32, #tpu.memory_space<vmem>>, %arg2: memref<16x4xf32, #tpu.memory_space<vmem>>, %arg3: memref<16x128xbf16, #tpu.memory_space<vmem>>, %arg4: memref<1x128xf32, #tpu.memory_space<vmem>>, %arg5: memref<4x128xbf16, #tpu.memory_space<vmem>>, %arg6: memref<1x128xf32, #tpu.memory_space<vmem>>, %arg7: memref<256x128xbf16, #tpu.memory_space<vmem>>, %arg8: memref<1x128xf32, #tpu.memory_space<vmem>>, %arg9: memref<8x128xf32, #tpu.memory_space<vmem>>, %arg10: memref<1x1xf32, #tpu.memory_space<smem>>, %arg11: memref<1x16xf32, #tpu.memory_space<vmem>>) attributes {dimension_semantics = [#tpu.dimension_semantics<parallel>], iteration_bounds = array<i64: 1>, scalar_prefetch = 0 : i64, scratch_operands = 0 : i64, tpu.core_type = #tpu.core_type<tc>, window_params = [{transform_indices = @transform_0, window_bounds = array<i64: 16, 16>}, {transform_indices = @transform_1, window_bounds = array<i64: 16, 4>}, {pipeline_mode = #tpu.pipeline_mode<synchronous>, transform_indices = @transform_2, window_bounds = array<i64: 16, 128>}, {pipeline_mode = #tpu.pipeline_mode<synchronous>, transform_indices = @transform_3, window_bounds = array<i64: 1, 128>}, {pipeline_mode = #tpu.pipeline_mode<synchronous>, transform_indices = @transform_4, window_bounds = array<i64: 4, 128>}, {pipeline_mode = #tpu.pipeline_mode<synchronous>, transform_indices = @transform_5, window_bounds = array<i64: 1, 128>}, {pipeline_mode = #tpu.pipeline_mode<synchronous>, transform_indices = @transform_6, window_bounds = array<i64: 256, 128>}, {pipeline_mode = #tpu.pipeline_mode<synchronous>, transform_indices = @transform_7, window_bounds = array<i64: 1, 128>}, {pipeline_mode = #tpu.pipeline_mode<synchronous>, transform_indices = @transform_8, window_bounds = array<i64: 8, 128>}, {transform_indices = @transform_9, window_bounds = array<i64: 1, 1>}, {transform_indices = @transform_10, window_bounds = array<i64: 1, 16>}]} {
    %c0 = arith.constant 0 : index
    %c0_0 = arith.constant 0 : index
    %0 = vector.load %arg1[%c0, %c0_0] : memref<16x16xf32, #tpu.memory_space<vmem>>, vector<16x16xf32>
    %1 = arith.truncf %0 : vector<16x16xf32> to vector<16x16xbf16>
    %c0_1 = arith.constant 0 : index
    %c0_2 = arith.constant 0 : index
    %2 = vector.load %arg3[%c0_1, %c0_2] : memref<16x128xbf16, #tpu.memory_space<vmem>>, vector<16x128xbf16>
    %cst = arith.constant dense<0.000000e+00> : vector<16x128xf32>
    %3 = tpu.matmul %1, %2, %cst {dimension_numbers = #tpu.dot_dimension_numbers<[1], [0], [0], [1], [0, 0, 1, 1], [], []>} : vector<16x16xbf16>, vector<16x128xbf16>, vector<16x128xf32> -> vector<16x128xf32>
    %c0_3 = arith.constant 0 : index
    %c0_4 = arith.constant 0 : index
    %4 = vector.load %arg4[%c0_3, %c0_4] : memref<1x128xf32, #tpu.memory_space<vmem>>, vector<1x128xf32>
    %5 = vector.broadcast %4 : vector<1x128xf32> to vector<16x128xf32>
    %6 = arith.addf %3, %5 : vector<16x128xf32>
    %cst_5 = arith.constant 0.000000e+00 : f32
    %7 = vector.broadcast %cst_5 : f32 to vector<16x128xf32>
    %8 = arith.maximumf %6, %7 : vector<16x128xf32>
    %9 = arith.truncf %8 : vector<16x128xf32> to vector<16x128xbf16>
    %c0_6 = arith.constant 0 : index
    %c0_7 = arith.constant 0 : index
    %10 = vector.load %arg7[%c0_6, %c0_7] : memref<256x128xbf16, #tpu.memory_space<vmem>>, vector<128x128xbf16>
    %cst_8 = arith.constant dense<0.000000e+00> : vector<16x128xf32>
    %11 = tpu.matmul %9, %10, %cst_8 {dimension_numbers = #tpu.dot_dimension_numbers<[1], [0], [0], [1], [0, 0, 1, 1], [], []>} : vector<16x128xbf16>, vector<128x128xbf16>, vector<16x128xf32> -> vector<16x128xf32>
    %c0_9 = arith.constant 0 : index
    %c0_10 = arith.constant 0 : index
    %12 = vector.load %arg2[%c0_9, %c0_10] : memref<16x4xf32, #tpu.memory_space<vmem>>, vector<16x4xf32>
    %13 = arith.truncf %12 : vector<16x4xf32> to vector<16x4xbf16>
    %c0_11 = arith.constant 0 : index
    %c0_12 = arith.constant 0 : index
    %14 = vector.load %arg5[%c0_11, %c0_12] : memref<4x128xbf16, #tpu.memory_space<vmem>>, vector<4x128xbf16>
    %cst_13 = arith.constant dense<0.000000e+00> : vector<16x128xf32>
    %15 = tpu.matmul %13, %14, %cst_13 {dimension_numbers = #tpu.dot_dimension_numbers<[1], [0], [0], [1], [0, 0, 1, 1], [], []>} : vector<16x4xbf16>, vector<4x128xbf16>, vector<16x128xf32> -> vector<16x128xf32>
    %c0_14 = arith.constant 0 : index
    %c0_15 = arith.constant 0 : index
    %16 = vector.load %arg6[%c0_14, %c0_15] : memref<1x128xf32, #tpu.memory_space<vmem>>, vector<1x128xf32>
    %17 = vector.broadcast %16 : vector<1x128xf32> to vector<16x128xf32>
    %18 = arith.addf %15, %17 : vector<16x128xf32>
    %cst_16 = arith.constant 0.000000e+00 : f32
    %19 = vector.broadcast %cst_16 : f32 to vector<16x128xf32>
    %20 = arith.maximumf %18, %19 : vector<16x128xf32>
    %21 = arith.truncf %20 : vector<16x128xf32> to vector<16x128xbf16>
    %c128 = arith.constant 128 : index
    %c0_17 = arith.constant 0 : index
    %22 = vector.load %arg7[%c128, %c0_17] : memref<256x128xbf16, #tpu.memory_space<vmem>>, vector<128x128xbf16>
    %cst_18 = arith.constant dense<0.000000e+00> : vector<16x128xf32>
    %23 = tpu.matmul %21, %22, %cst_18 {dimension_numbers = #tpu.dot_dimension_numbers<[1], [0], [0], [1], [0, 0, 1, 1], [], []>} : vector<16x128xbf16>, vector<128x128xbf16>, vector<16x128xf32> -> vector<16x128xf32>
    %24 = arith.addf %11, %23 : vector<16x128xf32>
    %c0_19 = arith.constant 0 : index
    %c0_20 = arith.constant 0 : index
    %25 = vector.load %arg8[%c0_19, %c0_20] : memref<1x128xf32, #tpu.memory_space<vmem>>, vector<1x128xf32>
    %26 = vector.broadcast %25 : vector<1x128xf32> to vector<16x128xf32>
    %27 = arith.addf %24, %26 : vector<16x128xf32>
    %cst_21 = arith.constant 0.000000e+00 : f32
    %28 = vector.broadcast %cst_21 : f32 to vector<16x128xf32>
    %29 = arith.maximumf %27, %28 : vector<16x128xf32>
    %c0_22 = arith.constant 0 : index
    %c0_23 = arith.constant 0 : index
    %30 = vector.load %arg9[%c0_22, %c0_23] : memref<8x128xf32, #tpu.memory_space<vmem>>, vector<8x128xf32>
    %cst_24 = arith.constant dense<0.000000e+00> : vector<8x16xf32>
    %31 = tpu.matmul %30, %29, %cst_24 {dimension_numbers = #tpu.dot_dimension_numbers<[1], [1], [0], [0], [0, 0, 1, 0], [], []>} : vector<8x128xf32>, vector<16x128xf32>, vector<8x16xf32> -> vector<8x16xf32>
    %32 = vector.extract_strided_slice %31 {offsets = [0, 0], sizes = [1, 16], strides = [1, 1]} : vector<8x16xf32> to vector<1x16xf32>
    %c0_25 = arith.constant 0 : index
    %c0_26 = arith.constant 0 : index
    %33 = memref.load %arg10[%c0_25, %c0_26] : memref<1x1xf32, #tpu.memory_space<smem>>
    %34 = vector.broadcast %33 : f32 to vector<1x16xf32>
    %35 = arith.addf %32, %34 : vector<1x16xf32>
    %c0_27 = arith.constant 0 : index
    %c0_28 = arith.constant 0 : index
    %36 = vector.load %arg11[%c0_27, %c0_28] : memref<1x16xf32, #tpu.memory_space<vmem>>, vector<1x16xf32>
    tpu.vector_store %arg11[%c0_27, %c0_28], %35 {strides = array<i32>} : memref<1x16xf32, #tpu.memory_space<vmem>>, vector<1x16xf32>,
    return
  }
  func.func @transform_0(%arg0: i32) -> (i32, i32) {
    %c0_i32 = arith.constant 0 : i32
    %c0_i32_0 = arith.constant 0 : i32
    return %arg0, %c0_i32 : i32, i32
  }
  func.func @transform_1(%arg0: i32) -> (i32, i32) {
    %c0_i32 = arith.constant 0 : i32
    %c0_i32_0 = arith.constant 0 : i32
    return %arg0, %c0_i32 : i32, i32
  }
  func.func @transform_2(%arg0: i32) -> (i32, i32) {
    %c0_i32 = arith.constant 0 : i32
    %c0_i32_0 = arith.constant 0 : i32
    %c0_i32_1 = arith.constant 0 : i32
    return %c0_i32, %c0_i32_0 : i32, i32
  }
  func.func @transform_3(%arg0: i32) -> (i32, i32) {
    %c0_i32 = arith.constant 0 : i32
    %c0_i32_0 = arith.constant 0 : i32
    %c0_i32_1 = arith.constant 0 : i32
    return %c0_i32, %c0_i32_0 : i32, i32
  }
  func.func @transform_4(%arg0: i32) -> (i32, i32) {
    %c0_i32 = arith.constant 0 : i32
    %c0_i32_0 = arith.constant 0 : i32
    %c0_i32_1 = arith.constant 0 : i32
    return %c0_i32, %c0_i32_0 : i32, i32
  }
  func.func @transform_5(%arg0: i32) -> (i32, i32) {
    %c0_i32 = arith.constant 0 : i32
    %c0_i32_0 = arith.constant 0 : i32
    %c0_i32_1 = arith.constant 0 : i32
    return %c0_i32, %c0_i32_0 : i32, i32
  }
  func.func @transform_6(%arg0: i32) -> (i32, i32) {
    %c0_i32 = arith.constant 0 : i32
    %c0_i32_0 = arith.constant 0 : i32
    %c0_i32_1 = arith.constant 0 : i32
    return %c0_i32, %c0_i32_0 : i32, i32
  }
  func.func @transform_7(%arg0: i32) -> (i32, i32) {
    %c0_i32 = arith.constant 0 : i32
    %c0_i32_0 = arith.constant 0 : i32
    %c0_i32_1 = arith.constant 0 : i32
    return %c0_i32, %c0_i32_0 : i32, i32
  }
  func.func @transform_8(%arg0: i32) -> (i32, i32) {
    %c0_i32 = arith.constant 0 : i32
    %c0_i32_0 = arith.constant 0 : i32
    %c0_i32_1 = arith.constant 0 : i32
    return %c0_i32, %c0_i32_0 : i32, i32
  }
  func.func @transform_9(%arg0: i32) -> (i32, i32) {
    %c0_i32 = arith.constant 0 : i32
    %c0_i32_0 = arith.constant 0 : i32
    %c0_i32_1 = arith.constant 0 : i32
    return %c0_i32, %c0_i32_0 : i32, i32
  }
  func.func @transform_10(%arg0: i32) -> (i32, i32) {
    %c0_i32 = arith.constant 0 : i32
    %c0_i32_0 = arith.constant 0 : i32
    return %c0_i32, %arg0 : i32, i32
  }
}

</mosaic_0001>

<llo_original>
// kernel: critic_forward.1
$region0: #{critic_forward.1}
  #allocation0 [shape = 'u32[]', space=smem, size = 0x4, offset = 0x4, fixed_abs, tag = 'smem constant byte address 0x4 - core index']
  #allocation1 [shape = 'u32[144,128]{1,0:T(1,128)}', space=vmem, size = 0x12000, scoped, tag = 'internal scratch']
  #allocation2 [shape = 'f32[1,1]{1,0:T(1,128)S(6)}', space=smem, size = 0x200, scoped, tag = 'scoped memory for critic_forward.1']
  %s0 = inlined_call_operand.vmem [shape: f32[16,16], index: 0, kind: input, shape index: {}]
  %s1 = inlined_call_operand.vmem [shape: f32[16,4], index: 1, kind: input, shape index: {}]
  %s2 = inlined_call_operand.vmem [shape: bf16[16,128], index: 2, kind: input, shape index: {}]
  %s3 = inlined_call_operand.vmem [shape: f32[1,128], index: 3, kind: input, shape index: {}]
  %s4 = inlined_call_operand.vmem [shape: bf16[4,128], index: 4, kind: input, shape index: {}]
  %s5 = inlined_call_operand.vmem [shape: f32[1,128], index: 5, kind: input, shape index: {}]
  %s6 = inlined_call_operand.hbm [shape: bf16[256,128], index: 6, kind: input, shape index: {}]
  %s7 = inlined_call_operand.vmem [shape: f32[1,128], index: 7, kind: input, shape index: {}]
  %s8 = inlined_call_operand.vmem [shape: f32[8,128], index: 8, kind: input, shape index: {}]
  %s9 = inlined_call_operand.<no memory space> [shape: f32[1,1], index: 9, kind: input, shape index: {}]
  %s10 = inlined_call_operand.vmem [shape: f32[1,16], index: 10, kind: output, shape index: {}]
  %s11 = sld [smem:[#allocation0]]
  $region54: #{critic_forward.1} parent=0
    _
  %s13 = ssub.s32 1, %s11
  %s14 = scalar_select 0, %s13, %s11
  %15 = sst [smem:[#allocation2]] %s9
  $region1: #{critic_forward.1} parent=0
    #allocation3 [shape = 'u8[65536]{0}', space=vmem, size = 0x10000, scoped, tag = 'input window, operand 6, single buffered']
    #allocation4 [shape = 's32[1]{0}', space=sflag, size = 0x4, scoped, tag = 'scoped memory for critic_forward.1']
    %16 = vsyncpa [#allocation4], 0
    // Predicated region
    $region2: #{critic_forward.1} parent=1 // pred_check
      _
    $region3: #{critic_forward.1} parent=1 // pred_check_branch
      %18 = sbr.rel (0) target = $region5
    $region4: #{critic_forward.1} parent=1 // pred_region
      _
    $region5: #{critic_forward.1} parent=1 // pred_fallthru
      _
    // Predicated region
    $region6: #{critic_forward.1} parent=1 // pred_check
      _
    $region7: #{critic_forward.1} parent=1 // pred_check_branch
      %20 = sbr.rel (0) target = $region9
    $region8: #{critic_forward.1} parent=1 // pred_region
      _
    $region9: #{critic_forward.1} parent=1 // pred_fallthru
      _
    // Predicated region
    $region10: #{critic_forward.1} parent=1 // pred_check
      _
    $region11: #{critic_forward.1} parent=1 // pred_check_branch
      %22 = sbr.rel (0) target = $region13
    $region12: #{critic_forward.1} parent=1 // pred_region
      _
    $region13: #{critic_forward.1} parent=1 // pred_fallthru
      _
    // Predicated region
    $region14: #{critic_forward.1} parent=1 // pred_check
      _
    $region15: #{critic_forward.1} parent=1 // pred_check_branch
      %24 = sbr.rel (0) target = $region17
    $region16: #{critic_forward.1} parent=1 // pred_region
      _
    $region17: #{critic_forward.1} parent=1 // pred_fallthru
      _
    // Predicated region
    $region18: #{critic_forward.1} parent=1 // pred_check
      _
    $region19: #{critic_forward.1} parent=1 // pred_check_branch
      %26 = sbr.rel (0) target = $region21
    $region20: #{critic_forward.1} parent=1 // pred_region
      _
    $region21: #{critic_forward.1} parent=1 // pred_fallthru
      _
    // Predicated region
    $region22: #{critic_forward.1} parent=1 // pred_check
      _
    $region23: #{critic_forward.1} parent=1 // pred_check_branch
      %28 = sbr.rel (0) target = $region25
    $region24: #{critic_forward.1} parent=1 // pred_region
      _
    $region25: #{critic_forward.1} parent=1 // pred_fallthru
      _
    // Predicated region
    $region26: #{critic_forward.1} parent=1 // pred_check
      _
    $region27: #{critic_forward.1} parent=1 // pred_check_branch
      %30 = sbr.rel (0) target = $region29
    $region28: #{critic_forward.1} parent=1 // pred_region
      %s32 = ssub.s32 2048, 2048
      %33 = vsyncadd [#allocation4], %s32
      %s34 = sshll.u32 [#allocation3], 4
      %s35 = int_to_ptr.vmem [resolvable:$true] %s34
      %40 = dma.hbm_to_vmem [thread:$0]  %s6, 2048, %s35, [#allocation4], 64, 64, 4
    $region29: #{critic_forward.1} parent=1 // pred_fallthru
      _
    // Predicated region
    $region30: #{critic_forward.1} parent=1 // pred_check
      _
    $region31: #{critic_forward.1} parent=1 // pred_check_branch
      %42 = sbr.rel (0) target = $region33
    $region32: #{critic_forward.1} parent=1 // pred_region
      _
    $region33: #{critic_forward.1} parent=1 // pred_fallthru
      _
    // Predicated region
    $region34: #{critic_forward.1} parent=1 // pred_check
      _
    $region35: #{critic_forward.1} parent=1 // pred_check_branch
      %44 = sbr.rel (0) target = $region37
    $region36: #{critic_forward.1} parent=1 // pred_region
      _
    $region37: #{critic_forward.1} parent=1 // pred_fallthru
      _
    // Predicated region
    $region38: #{critic_forward.1} parent=1 // pred_check
      _
    $region39: #{critic_forward.1} parent=1 // pred_check_branch
      %46 = sbr.rel (0) target = $region41
    $region40: #{critic_forward.1} parent=1 // pred_region
      _
    $region41: #{critic_forward.1} parent=1 // pred_fallthru
      _
    // Predicated region
    $region42: #{critic_forward.1} parent=1 // pred_check
      _
    $region43: #{critic_forward.1} parent=1 // pred_check_branch
      %48 = sbr.rel (0) target = $region45
    $region44: #{critic_forward.1} parent=1 // pred_region
      %49 = dma.done [#allocation4], 2048
    $region45: #{critic_forward.1} parent=1 // pred_fallthru
      _
    %v51 = vld [vmem:[%s0] sm:$0xff]
    %v52 = vld [vmem:[%s0 + $0x8] sm:$0xff]
    %v53 = vpack.c.bf16 %v52, %v51
    %v54 = vld [vmem:[%s2] sm:$0xf]
    %v55 = vld [vmem:[%s2 + $0x4] sm:$0xf]
    %v56 = vld [vmem:[%s3] sm:$0x1]
    %v58 = vlaneseq
    %v59 = vshrl.u32 %v58, 7
    %v60 = vsub.s32 0, %v59
    %v61 = vrot.slane %v56, %v60
    %v65 = vunpack.c.l.b16 %v54
    %v66 = vunpack.c.l.b16 %v55
    %v67 = vpack.c.b16 %v66, %v65
    %vm69 = vcmask 130048
    %v71 = vsel %vm69, %v53, 0
    %73 = vmatprep.subr.bf16.mxu0 0
    %74 = vmatpush1.bf16.msra.mxu0 %v67
    %75 = vmatprep.subr.bf16.mxu0 0
    %76 = vmatpush1.bf16.msra.mxu0 0
    %77 = vmatprep.subr.bf16.mxu0 0
    %78 = vmatpush1.bf16.msra.mxu0 0
    %79 = vmatprep.subr.bf16.mxu0 0
    %80 = vmatpush1.bf16.msra.mxu0 0
    %81 = vmatprep.subr.bf16.mxu0 0
    %82 = vmatpush1.bf16.msra.mxu0 0
    %83 = vmatprep.subr.bf16.mxu0 0
    %84 = vmatpush1.bf16.msra.mxu0 0
    %85 = vmatprep.subr.bf16.mxu0 0
    %86 = vmatpush1.bf16.msra.mxu0 0
    %87 = vmatprep.subr.bf16.mxu0 0
    %88 = vmatpush1.bf16.msra.mxu0 0
    %89 = vmatprep.subr.bf16.mxu0 0
    %90 = vmatpush1.bf16.msra.mxu0 0
    %91 = vmatprep.subr.bf16.mxu0 0
    %92 = vmatpush1.bf16.msra.mxu0 0
    %93 = vmatprep.subr.bf16.mxu0 0
    %94 = vmatpush1.bf16.msra.mxu0 0
    %95 = vmatprep.subr.bf16.mxu0 0
    %96 = vmatpush1.bf16.msra.mxu0 0
    %97 = vmatprep.subr.bf16.mxu0 0
    %98 = vmatpush1.bf16.msra.mxu0 0
    %99 = vmatprep.subr.bf16.mxu0 0
    %100 = vmatpush1.bf16.msra.mxu0 0
    %101 = vmatprep.subr.bf16.mxu0 0
    %102 = vmatpush1.bf16.msra.mxu0 0
    %103 = vmatprep.subr.bf16.mxu0 0
    %104 = vmatpush1.bf16.msra.mxu0 0
    %105 = vmatprep.mubr.bf16.mxu0 0
    %106 = vmatmul.mubr.bf16.gmra.mrb[0].mxu0 %v71
    %v107 = vpop.f32.mrb[0].mxu0
    %v108 = vadd.f32 %v61, %v107
    %v109 = vpop.f32.mrb[0].mxu0
    %v110 = vpop.f32.mrb[0].mxu0
    %v111 = vadd.f32 %v61, %v110
    %v112 = vpop.f32.mrb[0].mxu0
    %113 = vdwg.mxu0
    %v114 = vmax.f32 %v108, 0.0
    %v115 = vmax.f32 %v111, 0.0
    %v116 = vpack.c.bf16 %v115, %v114
    %v117 = vld [vmem:[#allocation3] sm:$0xf]
    %v118 = vld [vmem:[#allocation3 + $0x4] sm:$0xf]
    %v119 = vld [vmem:[#allocation3 + $0x8] sm:$0xf]
    %v120 = vld [vmem:[#allocation3 + $0xc] sm:$0xf]
    %v121 = vld [vmem:[#allocation3 + $0x10] sm:$0xf]
    %v122 = vld [vmem:[#allocation3 + $0x14] sm:$0xf]
    %v123 = vld [vmem:[#allocation3 + $0x18] sm:$0xf]
    %v124 = vld [vmem:[#allocation3 + $0x1c] sm:$0xf]
    %v125 = vld [vmem:[#allocation3 + $0x20] sm:$0xf]
    %v126 = vld [vmem:[#allocation3 + $0x24] sm:$0xf]
    %v127 = vld [vmem:[#allocation3 + $0x28] sm:$0xf]
    %v128 = vld [vmem:[#allocation3 + $0x2c] sm:$0xf]
    %v129 = vld [vmem:[#allocation3 + $0x30] sm:$0xf]
    %v130 = vld [vmem:[#allocation3 + $0x34] sm:$0xf]
    %v131 = vld [vmem:[#allocation3 + $0x38] sm:$0xf]
    %v132 = vld [vmem:[#allocation3 + $0x3c] sm:$0xf]
    %v133 = vld [vmem:[%s1] sm:$0xff]
    %v134 = vld [vmem:[%s1 + $0x8] sm:$0xff]
    %v135 = vpack.c.bf16 %v134, %v133
    %v136 = vld [vmem:[%s4] sm:$0x3]
    %v137 = vld [vmem:[%s5] sm:$0x1]
    %v139 = vlaneseq
    %v140 = vshrl.u32 %v139, 7
    %v141 = vsub.s32 0, %v140
    %v142 = vrot.slane %v137, %v141
    %vm144 = vcmask 31744
    %v146 = vsel %vm144, %v135, 0
    %vm148 = vcmask 1041408
    %v150 = vsel %vm148, %v136, 0
    %152 = vmatprep.subr.bf16.mxu0 0
    %153 = vmatpush1.bf16.msra.mxu0 %v150
    %154 = vmatprep.subr.bf16.mxu0 0
    %155 = vmatpush1.bf16.msra.mxu0 0
    %156 = vmatprep.subr.bf16.mxu0 0
    %157 = vmatpush1.bf16.msra.mxu0 0
    %158 = vmatprep.subr.bf16.mxu0 0
    %159 = vmatpush1.bf16.msra.mxu0 0
    %160 = vmatprep.subr.bf16.mxu0 0
    %161 = vmatpush1.bf16.msra.mxu0 0
    %162 = vmatprep.subr.bf16.mxu0 0
    %163 = vmatpush1.bf16.msra.mxu0 0
    %164 = vmatprep.subr.bf16.mxu0 0
    %165 = vmatpush1.bf16.msra.mxu0 0
    %166 = vmatprep.subr.bf16.mxu0 0
    %167 = vmatpush1.bf16.msra.mxu0 0
    %168 = vmatprep.subr.bf16.mxu0 0
    %169 = vmatpush1.bf16.msra.mxu0 0
    %170 = vmatprep.subr.bf16.mxu0 0
    %171 = vmatpush1.bf16.msra.mxu0 0
    %172 = vmatprep.subr.bf16.mxu0 0
    %173 = vmatpush1.bf16.msra.mxu0 0
    %174 = vmatprep.subr.bf16.mxu0 0
    %175 = vmatpush1.bf16.msra.mxu0 0
    %176 = vmatprep.subr.bf16.mxu0 0
    %177 = vmatpush1.bf16.msra.mxu0 0
    %178 = vmatprep.subr.bf16.mxu0 0
    %179 = vmatpush1.bf16.msra.mxu0 0
    %180 = vmatprep.subr.bf16.mxu0 0
    %181 = vmatpush1.bf16.msra.mxu0 0
    %182 = vmatprep.subr.bf16.mxu0 0
    %183 = vmatpush1.bf16.msra.mxu0 0
    %184 = vmatprep.mubr.bf16.mxu0 0
    %185 = vmatmul.mubr.bf16.gmra.mrb[0].mxu0 %v146
    %v186 = vpop.f32.mrb[0].mxu0
    %v187 = vadd.f32 %v142, %v186
    %v188 = vpop.f32.mrb[0].mxu0
    %v189 = vpop.f32.mrb[0].mxu0
    %v190 = vadd.f32 %v142, %v189
    %v191 = vpop.f32.mrb[0].mxu0
    %192 = vdwg.mxu0
    %v193 = vmax.f32 %v187, 0.0
    %v194 = vmax.f32 %v190, 0.0
    %v195 = vpack.c.bf16 %v194, %v193
    %v196 = vld [vmem:[#allocation3 + $0x40] sm:$0xf]
    %v197 = vld [vmem:[#allocation3 + $0x44] sm:$0xf]
    %v198 = vld [vmem:[#allocation3 + $0x48] sm:$0xf]
    %v199 = vld [vmem:[#allocation3 + $0x4c] sm:$0xf]
    %v200 = vld [vmem:[#allocation3 + $0x50] sm:$0xf]
    %v201 = vld [vmem:[#allocation3 + $0x54] sm:$0xf]
    %v202 = vld [vmem:[#allocation3 + $0x58] sm:$0xf]
    %v203 = vld [vmem:[#allocation3 + $0x5c] sm:$0xf]
    %v204 = vld [vmem:[#allocation3 + $0x60] sm:$0xf]
    %v205 = vld [vmem:[#allocation3 + $0x64] sm:$0xf]
    %v206 = vld [vmem:[#allocation3 + $0x68] sm:$0xf]
    %v207 = vld [vmem:[#allocation3 + $0x6c] sm:$0xf]
    %v208 = vld [vmem:[#allocation3 + $0x70] sm:$0xf]
    %v209 = vld [vmem:[#allocation3 + $0x74] sm:$0xf]
    %v210 = vld [vmem:[#allocation3 + $0x78] sm:$0xf]
    %v211 = vld [vmem:[#allocation3 + $0x7c] sm:$0xf]
    %v228 = vunpack.c.l.b16 %v196
    %v229 = vunpack.c.l.b16 %v197
    %v230 = vunpack.c.l.b16 %v198
    %v231 = vunpack.c.l.b16 %v199
    %v232 = vunpack.c.l.b16 %v200
    %v233 = vunpack.c.l.b16 %v201
    %v234 = vunpack.c.l.b16 %v202
    %v235 = vunpack.c.l.b16 %v203
    %v236 = vunpack.c.l.b16 %v204
    %v237 = vunpack.c.l.b16 %v205
    %v238 = vunpack.c.l.b16 %v206
    %v239 = vunpack.c.l.b16 %v207
    %v240 = vunpack.c.l.b16 %v208
    %v241 = vunpack.c.l.b16 %v209
    %v242 = vunpack.c.l.b16 %v210
    %v243 = vunpack.c.l.b16 %v211
    %v244 = vpack.c.b16 %v229, %v228
    %v245 = vpack.c.b16 %v231, %v230
    %v246 = vpack.c.b16 %v233, %v232
    %v247 = vpack.c.b16 %v235, %v234
    %v248 = vpack.c.b16 %v237, %v236
    %v249 = vpack.c.b16 %v239, %v238
    %v250 = vpack.c.b16 %v241, %v240
    %v251 = vpack.c.b16 %v243, %v242
    %260 = vmatprep.subr.bf16.mxu0 0
    %261 = vmatpush1.bf16.msra.mxu0 %v244
    %262 = vmatprep.subr.bf16.mxu0 0
    %263 = vmatpush1.bf16.msra.mxu0 %v245
    %264 = vmatprep.subr.bf16.mxu0 0
    %265 = vmatpush1.bf16.msra.mxu0 %v246
    %266 = vmatprep.subr.bf16.mxu0 0
    %267 = vmatpush1.bf16.msra.mxu0 %v247
    %268 = vmatprep.subr.bf16.mxu0 0
    %269 = vmatpush1.bf16.msra.mxu0 %v248
    %270 = vmatprep.subr.bf16.mxu0 0
    %271 = vmatpush1.bf16.msra.mxu0 %v249
    %272 = vmatprep.subr.bf16.mxu0 0
    %273 = vmatpush1.bf16.msra.mxu0 %v250
    %274 = vmatprep.subr.bf16.mxu0 0
    %275 = vmatpush1.bf16.msra.mxu0 %v251
    %276 = vmatprep.subr.bf16.mxu0 0
    %277 = vmatpush1.bf16.msra.mxu0 0
    %278 = vmatprep.subr.bf16.mxu0 0
    %279 = vmatpush1.bf16.msra.mxu0 0
    %280 = vmatprep.subr.bf16.mxu0 0
    %281 = vmatpush1.bf16.msra.mxu0 0
    %282 = vmatprep.subr.bf16.mxu0 0
    %283 = vmatpush1.bf16.msra.mxu0 0
    %284 = vmatprep.subr.bf16.mxu0 0
    %285 = vmatpush1.bf16.msra.mxu0 0
    %286 = vmatprep.subr.bf16.mxu0 0
    %287 = vmatpush1.bf16.msra.mxu0 0
    %288 = vmatprep.subr.bf16.mxu0 0
    %289 = vmatpush1.bf16.msra.mxu0 0
    %290 = vmatprep.subr.bf16.mxu0 0
    %291 = vmatpush1.bf16.msra.mxu0 0
    %292 = vmatprep.mubr.bf16.mxu0 0
    %293 = vmatmul.mubr.bf16.gmra.mrb[0].mxu0 %v195
    %v294 = vpop.f32.mrb[0].mxu0
    %v295 = vadd.f32 0.0, %v294
    %v296 = vpop.f32.mrb[0].mxu0
    %v297 = vpop.f32.mrb[0].mxu0
    %v298 = vadd.f32 0.0, %v297
    %v299 = vpop.f32.mrb[0].mxu0
    %300 = vdwg.mxu0
    %v317 = vunpack.c.l.b16 %v117
    %v318 = vunpack.c.l.b16 %v118
    %v319 = vunpack.c.l.b16 %v119
    %v320 = vunpack.c.l.b16 %v120
    %v321 = vunpack.c.l.b16 %v121
    %v322 = vunpack.c.l.b16 %v122
    %v323 = vunpack.c.l.b16 %v123
    %v324 = vunpack.c.l.b16 %v124
    %v325 = vunpack.c.l.b16 %v125
    %v326 = vunpack.c.l.b16 %v126
    %v327 = vunpack.c.l.b16 %v127
    %v328 = vunpack.c.l.b16 %v128
    %v329 = vunpack.c.l.b16 %v129
    %v330 = vunpack.c.l.b16 %v130
    %v331 = vunpack.c.l.b16 %v131
    %v332 = vunpack.c.l.b16 %v132
    %v333 = vpack.c.b16 %v318, %v317
    %v334 = vpack.c.b16 %v320, %v319
    %v335 = vpack.c.b16 %v322, %v321
    %v336 = vpack.c.b16 %v324, %v323
    %v337 = vpack.c.b16 %v326, %v325
    %v338 = vpack.c.b16 %v328, %v327
    %v339 = vpack.c.b16 %v330, %v329
    %v340 = vpack.c.b16 %v332, %v331
    %349 = vmatprep.subr.bf16.mxu0 0
    %350 = vmatpush1.bf16.msra.mxu0 %v333
    %351 = vmatprep.subr.bf16.mxu0 0
    %352 = vmatpush1.bf16.msra.mxu0 %v334
    %353 = vmatprep.subr.bf16.mxu0 0
    %354 = vmatpush1.bf16.msra.mxu0 %v335
    %355 = vmatprep.subr.bf16.mxu0 0
    %356 = vmatpush1.bf16.msra.mxu0 %v336
    %357 = vmatprep.subr.bf16.mxu0 0
    %358 = vmatpush1.bf16.msra.mxu0 %v337
    %359 = vmatprep.subr.bf16.mxu0 0
    %360 = vmatpush1.bf16.msra.mxu0 %v338
    %361 = vmatprep.subr.bf16.mxu0 0
    %362 = vmatpush1.bf16.msra.mxu0 %v339
    %363 = vmatprep.subr.bf16.mxu0 0
    %364 = vmatpush1.bf16.msra.mxu0 %v340
    %365 = vmatprep.subr.bf16.mxu0 0
    %366 = vmatpush1.bf16.msra.mxu0 0
    %367 = vmatprep.subr.bf16.mxu0 0
    %368 = vmatpush1.bf16.msra.mxu0 0
    %369 = vmatprep.subr.bf16.mxu0 0
    %370 = vmatpush1.bf16.msra.mxu0 0
    %371 = vmatprep.subr.bf16.mxu0 0
    %372 = vmatpush1.bf16.msra.mxu0 0
    %373 = vmatprep.subr.bf16.mxu0 0
    %374 = vmatpush1.bf16.msra.mxu0 0
    %375 = vmatprep.subr.bf16.mxu0 0
    %376 = vmatpush1.bf16.msra.mxu0 0
    %377 = vmatprep.subr.bf16.mxu0 0
    %378 = vmatpush1.bf16.msra.mxu0 0
    %379 = vmatprep.subr.bf16.mxu0 0
    %380 = vmatpush1.bf16.msra.mxu0 0
    %381 = vmatprep.mubr.bf16.mxu0 0
    %382 = vmatmul.mubr.bf16.gmra.mrb[0].mxu0 %v116
    %v383 = vpop.f32.mrb[0].mxu0
    %v384 = vadd.f32 %v295, %v383
    %v385 = vpop.f32.mrb[0].mxu0
    %v386 = vpop.f32.mrb[0].mxu0
    %v387 = vadd.f32 %v298, %v386
    %v388 = vpop.f32.mrb[0].mxu0
    %389 = vdwg.mxu0
    %v390 = vld [vmem:[%s7] sm:$0x1]
    %v392 = vlaneseq
    %v393 = vshrl.u32 %v392, 7
    %v394 = vsub.s32 0, %v393
    %v395 = vrot.slane %v390, %v394
    %v397 = vadd.f32 %v384, %v395
    %v398 = vadd.f32 %v387, %v395
    %v399 = vmax.f32 %v397, 0.0
    %v400 = vmax.f32 %v398, 0.0
    %v401 = vld [vmem:[%s8] sm:$0xff]
    %402 = vmatprep.subr.mxu0 0.0
    %403 = vmatpush1.xpose.msra.mxu0 %v399
    %404 = vmatprep.subr.mxu0 0.0
    %405 = vmatpush1.xpose.msra.mxu0 %v400
    %406 = vmatprep.subr.mxu0 0.0
    %407 = vmatpush1.xpose.msra.mxu0 0.0
    %408 = vmatprep.subr.mxu0 0.0
    %409 = vmatpush1.xpose.msra.mxu0 0.0
    %410 = vmatprep.subr.mxu0 0.0
    %411 = vmatpush1.xpose.msra.mxu0 0.0
    %412 = vmatprep.subr.mxu0 0.0
    %413 = vmatpush1.xpose.msra.mxu0 0.0
    %414 = vmatprep.subr.mxu0 0.0
    %415 = vmatpush1.xpose.msra.mxu0 0.0
    %416 = vmatprep.subr.mxu0 0.0
    %417 = vmatpush1.xpose.msra.mxu0 0.0
    %418 = vmatprep.subr.mxu0 0.0
    %419 = vmatpush1.xpose.msra.mxu0 0.0
    %420 = vmatprep.subr.mxu0 0.0
    %421 = vmatpush1.xpose.msra.mxu0 0.0
    %422 = vmatprep.subr.mxu0 0.0
    %423 = vmatpush1.xpose.msra.mxu0 0.0
    %424 = vmatprep.subr.mxu0 0.0
    %425 = vmatpush1.xpose.msra.mxu0 0.0
    %426 = vmatprep.subr.mxu0 0.0
    %427 = vmatpush1.xpose.msra.mxu0 0.0
    %428 = vmatprep.subr.mxu0 0.0
    %429 = vmatpush1.xpose.msra.mxu0 0.0
    %430 = vmatprep.subr.mxu0 0.0
    %431 = vmatpush1.xpose.msra.mxu0 0.0
    %432 = vmatprep.subr.mxu0 0.0
    %433 = vmatpush1.xpose.msra.mxu0 0.0
    %434 = vmatprep.subr.mxu0 0.0
    %435 = vmatpush1.xpose.msra.mxu0 0.0
    %436 = vmatprep.subr.mxu0 0.0
    %437 = vmatpush1.xpose.msra.mxu0 0.0
    %438 = vmatprep.subr.mxu0 0.0
    %439 = vmatpush1.xpose.msra.mxu0 0.0
    %440 = vmatprep.subr.mxu0 0.0
    %441 = vmatpush1.xpose.msra.mxu0 0.0
    %442 = vmatprep.subr.mxu0 0.0
    %443 = vmatpush1.xpose.msra.mxu0 0.0
    %444 = vmatprep.subr.mxu0 0.0
    %445 = vmatpush1.xpose.msra.mxu0 0.0
    %446 = vmatprep.subr.mxu0 0.0
    %447 = vmatpush1.xpose.msra.mxu0 0.0
    %448 = vmatprep.subr.mxu0 0.0
    %449 = vmatpush1.xpose.msra.mxu0 0.0
    %450 = vmatprep.subr.mxu0 0.0
    %451 = vmatpush1.xpose.msra.mxu0 0.0
    %452 = vmatprep.subr.mxu0 0.0
    %453 = vmatpush1.xpose.msra.mxu0 0.0
    %454 = vmatprep.subr.mxu0 0.0
    %455 = vmatpush1.xpose.msra.mxu0 0.0
    %456 = vmatprep.subr.mxu0 0.0
    %457 = vmatpush1.xpose.msra.mxu0 0.0
    %458 = vmatprep.subr.mxu0 0.0
    %459 = vmatpush1.xpose.msra.mxu0 0.0
    %460 = vmatprep.subr.mxu0 0.0
    %461 = vmatpush1.xpose.msra.mxu0 0.0
    %462 = vmatprep.subr.mxu0 0.0
    %463 = vmatpush1.xpose.msra.mxu0 0.0
    %464 = vmatprep.subr.mxu0 0.0
    %465 = vmatpush1.xpose.msra.mxu0 0.0
    %466 = vmatprep.mubr.f32.mxu0 0.0
    %467 = vmatmul.mubr.f32.gmra.mrb[0].mxu0 %v401
    %v468 = vpop.f32.mrb[0].mxu0
    %v469 = vadd.f32 0.0, %v468
    %v470 = vpop.f32.mrb[0].mxu0
    %471 = vdwg.mxu0
    %s472 = sld [smem:[#allocation2]]
    %v473 = vstv %s472
    %v474 = vadd.f32 %v469, %v473
    %vm475 = vcmask 122880
    %476 = vst.msk [vmem:[%s10] sm:$0x1] %vm475, %v474
    // Predicated region
    $region46: #{critic_forward.1} parent=1 // pred_check
      _
    $region47: #{critic_forward.1} parent=1 // pred_check_branch
      %478 = sbr.rel (0) target = $region49
    $region48: #{critic_forward.1} parent=1 // pred_region
      _
    $region49: #{critic_forward.1} parent=1 // pred_fallthru
      _
    // Predicated region
    $region50: #{critic_forward.1} parent=1 // pred_check
      _
    $region51: #{critic_forward.1} parent=1 // pred_check_branch
      %480 = sbr.rel (0) target = $region53
    $region52: #{critic_forward.1} parent=1 // pred_region
      _
    $region53: #{critic_forward.1} parent=1 // pred_fallthru
      _
    %481 = vsyncpa [#allocation4], 1

</llo_original>
